<compile_context>
chip_gen: v7x
topology: tpu7x:2x2x1
jax: 0.10.0
libtpu: 0.0.40
codegen_flags: <defaults>
</compile_context>

<pallas_src>
import jax
import jax.numpy as jnp
from jax.experimental import pallas as pl
from jax.experimental.pallas import tpu as pltpu


def _dot_attn_kernel(x_ref, ctx_ref, w_ref):
    # x_ref block: (Nb, T, H), native dtype (no whole-block f32 upcast).
    x = x_ref[...]
    T = x.shape[1]

    # query = last timestep of each batch element: (Nb, 1, H)
    q = x[:, T - 1:T, :]

    # scores[b, t] = sum_h x[b, t, h] * q[b, h]
    # x is the LHS so its (T, H) tile feeds the MXU natively (contraction over the
    # trailing H of both operands); only the tiny (1, H) query needs a relayout,
    # never the full (T, H) tile. Accumulation is f32.
    s3 = jnp.einsum("bth,bqh->btq", x, q,
                    preferred_element_type=jnp.float32)        # (Nb, T, 1) f32
    s = s3[:, :, 0]                                            # (Nb, T) f32, T on lanes

    # Numerically-stable softmax over T, in f32 (tiny: block_b x T).
    m = jnp.max(s, axis=-1, keepdims=True)
    e = jnp.exp(s - m)
    denom = jnp.sum(e, axis=-1, keepdims=True)
    # approx=True would be cheaper (EUP slot) but changes the returned weights
    # slightly; keep exact so weights sum to 1.
    w = e * pl.reciprocal(denom, approx=False)                 # (Nb, T) f32

    # context[b, h] = sum_t w[b, t] * x[b, t, h]
    # Both operands MXU-native: w (1, T) contracts its last dim, x (T, H) its
    # second-to-last. w is cast back to the input dtype (bf16 inputs stay
    # MXU-native); accumulation stays f32.
    w3 = w.astype(x.dtype)[:, None, :]                         # (Nb, 1, T)
    ctx = jnp.einsum("bqt,bth->bqh", w3, x,
                     preferred_element_type=jnp.float32)       # (Nb, 1, H) f32

    # Lane/sublane-dense 2-D stores.
    ctx_ref[...] = ctx[:, 0, :].astype(ctx_ref.dtype)          # (Nb, H)
    w_ref[...] = w.astype(w_ref.dtype)                         # (Nb, T)


def _vmem_capacity_bytes():
    """Generation-aware VMEM capacity (v5e/v6e: 128 MiB, v7x: 64 MiB per TC)."""
    try:
        cap = int(getattr(pltpu.get_tpu_info(), "vmem_capacity_bytes", 0))
        if cap > 0:
            return cap
    except Exception:
        pass
    return 64 << 20  # conservative default = v7x per-TC size


def _sublane_multiple(itemsize):
    # Sub-32-bit dtypes pack 2/4 rows per sublane; keeping the output-tile sublane
    # dim a multiple of the packed count gives unmasked dense stores.
    return 8 * max(1, 4 // max(1, itemsize))


def _plan_blocks(B, T, H, itemsize, vmem_cap, block_b=None):
    """Pick (block_b, vmem_limit_bytes). Never pads x on the host."""
    mult = _sublane_multiple(itemsize)
    per_in = max(1, T * H * itemsize)          # one batch row of x
    per_out = (T + H) * itemsize               # one row of each output
    per_f32 = (3 * T + H) * 4                  # softmax / f32 temporaries (rough)

    budget = vmem_cap // 2                     # leave half of VMEM as headroom

    def footprint(nb):
        # double-buffered input + double-buffered outputs + f32 temporaries
        return 2 * nb * per_in + 2 * nb * per_out + nb * per_f32

    if block_b is None:
        # ~8 MiB input tiles amortize the per-grid-step overhead (>=86% of HBM
        # roofline per measured pipelining data); bigger buys little and risks
        # VMEM pressure on v7x.
        nb = max(1, (8 << 20) // per_in)
        while nb > 1 and footprint(nb) > (budget * 3) // 4:
            nb //= 2

        if B <= nb:
            block_b = max(1, B)                # single step, full-extent blocks
        else:
            # Prefer a divisor of B near the target so the grid covers B exactly
            # (no padding, no partial blocks). Divisor must be a multiple of 8 so
            # the (block_b, H)/(block_b, T) output tiles satisfy the sublane rule.
            divisors = set()
            d = 1
            while d * d <= B:
                if B % d == 0:
                    divisors.add(d)
                    divisors.add(B // d)
                d += 1
            cand = [c for c in divisors if c <= nb]
            aligned = [c for c in cand if c % mult == 0]
            aligned8 = [c for c in cand if c % 8 == 0]
            best = max(aligned) if aligned else (max(aligned8) if aligned8 else 0)
            threshold = max(mult, nb // 4)
            if best >= threshold:
                block_b = best
            else:
                # No convenient divisor (e.g. prime batch): use a target-sized,
                # sublane-aligned block and let Pallas mask the ragged last block
                # (out-of-bounds batch rows read unspecified data that stays
                # confined to those rows; their writes are dropped). Still no
                # host-side jnp.pad copy of x and no output slicing copies.
                block_b = max(mult, (nb // mult) * mult)
    else:
        block_b = int(max(1, block_b))

    block_b = min(block_b, B) if B > 0 else 1

    fp = footprint(block_b)
    vmem_limit = max(16 << 20, fp + fp // 2 + (4 << 20))
    vmem_limit = int(min(vmem_limit, (vmem_cap * 3) // 4))
    # Note: if a single batch row (~2*T*H*itemsize plus temporaries) exceeds ~3/4 of
    # VMEM (long sequences on v7x), a T-tiled flash-style online-softmax path would
    # be needed; not implemented here.
    return block_b, vmem_limit


def dot_product_attention(x, *, block_b=None):
    """x: (B, T, H). Returns (context (B, 1, H), attention_weights (B, 1, T))."""
    B, T, H = x.shape
    itemsize = jnp.dtype(x.dtype).itemsize
    vmem_cap = _vmem_capacity_bytes()
    block_b, vmem_limit = _plan_blocks(B, T, H, itemsize, vmem_cap, block_b)
    num_blocks = pl.cdiv(B, block_b)

    ctx2d, w2d = pl.pallas_call(
        _dot_attn_kernel,
        out_shape=(
            jax.ShapeDtypeStruct((B, H), x.dtype),
            jax.ShapeDtypeStruct((B, T), x.dtype),
        ),
        grid_spec=pltpu.PrefetchScalarGridSpec(
            num_scalar_prefetch=0,
            grid=(num_blocks,),
            in_specs=[pl.BlockSpec((block_b, T, H), lambda b: (b, 0, 0))],
            out_specs=[
                pl.BlockSpec((block_b, H), lambda b: (b, 0)),
                pl.BlockSpec((block_b, T), lambda b: (b, 0)),
            ],
        ),
        compiler_params=pltpu.CompilerParams(
            # Independent batch work: shard the grid across TensorCores on
            # megacore parts (v7x). No-op (and no cost) on single-TC v5e/v6e.
            dimension_semantics=("parallel",),
            vmem_limit_bytes=vmem_limit,
        ),
    )(x)

    ctx = ctx2d.reshape(B, 1, H)
    w = w2d.reshape(B, 1, T)
    return ctx, w


def _reference(x):
    # Pure-JAX reference matching the PyTorch forward exactly.
    query = x[:, -1:, :]                                   # (B, 1, H)
    scores = jnp.einsum("bqh,bth->bqt", query, x)          # (B, 1, T)
    weights = jax.nn.softmax(scores, axis=-1)              # (B, 1, T)
    context = jnp.einsum("bqt,bth->bqh", weights, x)       # (B, 1, H)
    return context, weights


if __name__ == "__main__":
    key = jax.random.PRNGKey(0)

    # Small deterministic check consistent with the module (batch=2, seq=8, hidden=32).
    B, T, H = 2, 8, 32
    x = jax.random.normal(key, (B, T, H), dtype=jnp.float32)
    ctx, w = dot_product_attention(x)
    jax.block_until_ready((ctx, w))
    ctx_ref, w_ref = _reference(x)
    assert ctx.shape == (B, 1, H) and w.shape == (B, 1, T)
    assert jnp.allclose(ctx, ctx_ref, atol=1e-5, rtol=1e-5)
    assert jnp.allclose(w, w_ref, atol=1e-5, rtol=1e-5)

    # Exercise the multi-step grid path (block_b divides B; no padding anywhere).
    B2 = 32
    x2 = jax.random.normal(jax.random.PRNGKey(1), (B2, T, H), dtype=jnp.float32)
    ctx2, w2 = dot_product_attention(x2, block_b=16)
    jax.block_until_ready((ctx2, w2))
    ctx2_ref, w2_ref = _reference(x2)
    assert jnp.allclose(ctx2, ctx2_ref, atol=1e-5, rtol=1e-5)
    assert jnp.allclose(w2, w2_ref, atol=1e-5, rtol=1e-5)

    print("KERNEL_OK")
</pallas_src>

<mosaic_0001>
module attributes {stable_mosaic.version = 11 : i64} {
  func.func @_dot_attn_kernel(%arg0: i32, %arg1: memref<2x8x32xf32, #tpu.memory_space<vmem>>, %arg2: memref<2x32xf32, #tpu.memory_space<vmem>>, %arg3: memref<2x8xf32, #tpu.memory_space<vmem>>) attributes {dimension_semantics = [#tpu.dimension_semantics<parallel>], iteration_bounds = array<i64: 1>, scalar_prefetch = 0 : i64, scratch_operands = 0 : i64, tpu.core_type = #tpu.core_type<tc>, window_params = [{transform_indices = @transform_0, window_bounds = array<i64: 2, 8, 32>}, {transform_indices = @transform_1, window_bounds = array<i64: 2, 32>}, {transform_indices = @transform_2, window_bounds = array<i64: 2, 8>}]} {
    %c0 = arith.constant 0 : index
    %c0_0 = arith.constant 0 : index
    %c0_1 = arith.constant 0 : index
    %0 = vector.load %arg1[%c0, %c0_0, %c0_1] : memref<2x8x32xf32, #tpu.memory_space<vmem>>, vector<2x8x32xf32>
    %1 = vector.extract_strided_slice %0 {offsets = [0, 7, 0], sizes = [2, 1, 32], strides = [1, 1, 1]} : vector<2x8x32xf32> to vector<2x1x32xf32>
    "tpu.trace_start"() <{level = 10 : i32, message = "bth,bqh->btq"}> : () -> ()
    %cst = arith.constant dense<0.000000e+00> : vector<2x8x1xf32>
    %2 = tpu.matmul %0, %1, %cst {dimension_numbers = #tpu.dot_dimension_numbers<[2], [2], [1], [1], [0, 0, 0, 1, 1, 1], [0], [0]>} : vector<2x8x32xf32>, vector<2x1x32xf32>, vector<2x8x1xf32> -> vector<2x8x1xf32>
    "tpu.trace_stop"() : () -> ()
    %3 = vector.shape_cast %2 : vector<2x8x1xf32> to vector<2x8xf32>
    %cst_2 = arith.constant dense<0xFF800000> : vector<2xf32>
    %4 = vector.multi_reduction <maximumf>, %3, %cst_2 [1] : vector<2x8xf32> to vector<2xf32>
    %5 = vector.shape_cast %4 : vector<2xf32> to vector<2x1xf32>
    %6 = vector.broadcast %5 : vector<2x1xf32> to vector<2x8xf32>
    %7 = arith.subf %3, %6 : vector<2x8xf32>
    %8 = math.exp %7 : vector<2x8xf32>
    %cst_3 = arith.constant dense<0.000000e+00> : vector<2xf32>
    %9 = vector.multi_reduction <add>, %8, %cst_3 [1] : vector<2x8xf32> to vector<2xf32>
    %10 = vector.shape_cast %9 : vector<2xf32> to vector<2x1xf32>
    %11 = tpu.reciprocal %10 : vector<2x1xf32> -> vector<2x1xf32>
    %12 = vector.broadcast %11 : vector<2x1xf32> to vector<2x8xf32>
    %13 = arith.mulf %8, %12 : vector<2x8xf32>
    %14 = vector.shape_cast %13 : vector<2x8xf32> to vector<2x1x8xf32>
    "tpu.trace_start"() <{level = 10 : i32, message = "bqt,bth->bqh"}> : () -> ()
    %cst_4 = arith.constant dense<0.000000e+00> : vector<2x1x32xf32>
    %15 = tpu.matmul %14, %0, %cst_4 {dimension_numbers = #tpu.dot_dimension_numbers<[2], [1], [1], [2], [0, 0, 0, 1, 1, 2], [0], [0]>} : vector<2x1x8xf32>, vector<2x8x32xf32>, vector<2x1x32xf32> -> vector<2x1x32xf32>
    "tpu.trace_stop"() : () -> ()
    %16 = vector.shape_cast %15 : vector<2x1x32xf32> to vector<2x32xf32>
    %c0_5 = arith.constant 0 : index
    %c0_6 = arith.constant 0 : index
    %17 = vector.load %arg2[%c0_5, %c0_6] : memref<2x32xf32, #tpu.memory_space<vmem>>, vector<2x32xf32>
    tpu.vector_store %arg2[%c0_5, %c0_6], %16 {strides = array<i32>} : memref<2x32xf32, #tpu.memory_space<vmem>>, vector<2x32xf32>,
    %c0_7 = arith.constant 0 : index
    %c0_8 = arith.constant 0 : index
    %18 = vector.load %arg3[%c0_7, %c0_8] : memref<2x8xf32, #tpu.memory_space<vmem>>, vector<2x8xf32>
    tpu.vector_store %arg3[%c0_7, %c0_8], %13 {strides = array<i32>} : memref<2x8xf32, #tpu.memory_space<vmem>>, vector<2x8xf32>,
    return
  }
  func.func @transform_0(%arg0: i32) -> (i32, i32, i32) {
    %c0_i32 = arith.constant 0 : i32
    %c0_i32_0 = arith.constant 0 : i32
    %c0_i32_1 = arith.constant 0 : i32
    return %arg0, %c0_i32, %c0_i32_0 : i32, i32, i32
  }
  func.func @transform_1(%arg0: i32) -> (i32, i32) {
    %c0_i32 = arith.constant 0 : i32
    %c0_i32_0 = arith.constant 0 : i32
    return %arg0, %c0_i32 : i32, i32
  }
  func.func @transform_2(%arg0: i32) -> (i32, i32) {
    %c0_i32 = arith.constant 0 : i32
    %c0_i32_0 = arith.constant 0 : i32
    return %arg0, %c0_i32 : i32, i32
  }
}

</mosaic_0001>

<llo_original>
// kernel: tpu_custom_call.1
$region0: #{tpu_custom_call.1}
  #allocation0 [shape = 'u32[]', space=smem, size = 0x4, offset = 0x4, fixed_abs, tag = 'smem constant byte address 0x4 - core index']
  #allocation1 [shape = 'u32[144,128]{1,0:T(1,128)}', space=vmem, size = 0x12000, scoped, tag = 'internal scratch']
  %s0 = inlined_call_operand.hbm [shape: f32[2,8,32], index: 0, kind: input, shape index: {}]
  %s1 = inlined_call_operand.hbm [shape: f32[2,32], index: 1, kind: output, shape index: {0}]
  %s2 = inlined_call_operand.hbm [shape: f32[2,8], index: 2, kind: output, shape index: {1}]
  %3 = xla_tuple %s1, %s2
  %s4 = sld [smem:[#allocation0]]
  $region26: #{tpu_custom_call.1} parent=0
    _
  %s6 = ssub.s32 1, %s4
  %s7 = scalar_select 0, %s6, %s4
  $region1: #{tpu_custom_call.1} parent=0
    #allocation2 [shape = 'u8[8192]{0}', space=vmem, size = 0x2000, scoped, tag = 'input window, operand 0, single buffered']
    #allocation3 [shape = 's32[1]{0}', space=sflag, size = 0x4, scoped, tag = 'scoped memory for tpu_custom_call.1']
    #allocation4 [shape = 's32[1]{0}', space=sflag, size = 0x4, scoped, tag = 'scoped memory for tpu_custom_call.1']
    #allocation5 [shape = 'u8[1024]{0}', space=vmem, size = 0x400, scoped, tag = 'output window, operand 0, single buffered']
    #allocation6 [shape = 'u8[1024]{0}', space=vmem, size = 0x400, scoped, tag = 'output window, operand 1, single buffered']
    #allocation7 [shape = 's32[1]{0}', space=sflag, size = 0x4, scoped, tag = 'scoped memory for tpu_custom_call.1']
    %8 = vsyncpa [#allocation3], 0
    %9 = vsyncpa [#allocation4], 0
    %10 = vsyncpa [#allocation7], 0
    // Predicated region
    $region2: #{tpu_custom_call.1} parent=1 // pred_check
      _
    $region3: #{tpu_custom_call.1} parent=1 // pred_check_branch
      %12 = sbr.rel (0) target = $region5
    $region4: #{tpu_custom_call.1} parent=1 // pred_region
      %s14 = ssub.s32 256, 256
      %15 = vsyncadd [#allocation3], %s14
      %s16 = sshll.u32 [#allocation2], 4
      %s17 = int_to_ptr.vmem [resolvable:$true] %s16
      %22 = dma.hbm_to_vmem [thread:$0]  %s0, 256, %s17, [#allocation3], 128, 128, 8
    $region5: #{tpu_custom_call.1} parent=1 // pred_fallthru
      _
    // Predicated region
    $region6: #{tpu_custom_call.1} parent=1 // pred_check
      _
    $region7: #{tpu_custom_call.1} parent=1 // pred_check_branch
      %24 = sbr.rel (0) target = $region9
    $region8: #{tpu_custom_call.1} parent=1 // pred_region
      %25 = dma.done [#allocation3], 256
    $region9: #{tpu_custom_call.1} parent=1 // pred_fallthru
      _
    %v26 = vld [vmem:[#allocation2] sm:$0xff]
    %v27 = vld [vmem:[#allocation2 + $0x8] sm:$0xff]
    %v28 = vlaneseq
    %v29 = vshrl.u32 %v28, 7
    %v30 = vsub.s32 7, %v29
    %v31 = vrot.slane %v26, %v30
    %v32 = vmul.f32 %v26, %v31
    %vm33 = vcmask 261120
    %v34 = vsel %vm33, %v32, 0.0
    %35 = vadd.xlane.f32.xlu0 %v34
    %v36 = vpop.xlane.xlu0 %35
    %v37 = vlaneseq
    %v38 = vshrl.u32 %v37, 7
    %v39 = vsub.s32 7, %v38
    %v40 = vrot.slane %v27, %v39
    %v41 = vmul.f32 %v27, %v40
    %v42 = vsel %vm33, %v41, 0.0
    %43 = vadd.xlane.f32.xlu0 %v42
    %v44 = vpop.xlane.xlu0 %43
    %47 = vset.pattern.permute.xlu0 0
    %48 = vperm.xlu0 %47, %v36
    %v49 = vpop.permute.xlu0 %48
    %50 = vset.pattern.permute.xlu0 0
    %51 = vperm.xlu0 %50, %v44
    %v52 = vpop.permute.xlu0 %51
    %v53 = vlaneseq
    %v54 = vand.u32 %v53, 127
    %v55 = vlaneseq
    %v56 = vshrl.u32 %v55, 7
    %v57 = vsub.s32 %v54, %v56
    %v58 = vrot.slane %v49, %v57
    %v59 = vlaneseq
    %v60 = vshrl.u32 %v59, 7
    %v61 = vsub.s32 %v54, %v60
    %v62 = vrot.slane %v52, %v61
    %vm63 = vcmask 1041409
    %v64 = vsel %vm63, %v62, %v58
    %vm66 = vcmask 58368
    %v67 = vsel %vm66, %v64, -inf
    %68 = vmax.xlane.f32.xlu0 %v67
    %v69 = vpop.xlane.xlu0 %68
    %v71 = vlaneseq
    %v72 = vshrl.u32 %v71, 7
    %v73 = vsub.s32 0, %v72
    %v74 = vrot.slane %v69, %v73
    %v75 = vlaneseq
    %v76 = vshrl.u32 %v75, 7
    %v77 = vsub.s32 1, %v76
    %v78 = vrot.slane %v69, %v77
    %v81 = vsub.f32 %v36, %v74
    %v82 = vsub.f32 %v44, %v78
    %v83 = vmul.f32 %v81, 1.442695
    %v84 = vpow.pop %v83
    %v85 = vmul.f32 %v82, 1.442695
    %v86 = vpow.pop %v85
    %89 = vset.pattern.permute.xlu0 0
    %90 = vperm.xlu0 %89, %v84
    %v91 = vpop.permute.xlu0 %90
    %92 = vset.pattern.permute.xlu0 0
    %93 = vperm.xlu0 %92, %v86
    %v94 = vpop.permute.xlu0 %93
    %v95 = vlaneseq
    %v96 = vshrl.u32 %v95, 7
    %v97 = vsub.s32 %v54, %v96
    %v98 = vrot.slane %v91, %v97
    %v99 = vlaneseq
    %v100 = vshrl.u32 %v99, 7
    %v101 = vsub.s32 %v54, %v100
    %v102 = vrot.slane %v94, %v101
    %v103 = vsel %vm63, %v102, %v98
    %v105 = vsel %vm66, %v103, 0.0
    %106 = vadd.xlane.f32.xlu0 %v105
    %v107 = vpop.xlane.xlu0 %106
    %v108 = vrcp.pop %v107
    %v110 = vlaneseq
    %v111 = vshrl.u32 %v110, 7
    %v112 = vsub.s32 0, %v111
    %v113 = vrot.slane %v108, %v112
    %v114 = vlaneseq
    %v115 = vshrl.u32 %v114, 7
    %v116 = vsub.s32 1, %v115
    %v117 = vrot.slane %v108, %v116
    %v120 = vmul.f32 %v84, %v113
    %v121 = vmul.f32 %v86, %v117
    %123 = vset.pattern.permute.xlu0 0
    %124 = vperm.xlu0 %123, %v120
    %v125 = vpop.permute.xlu0 %124
    %v126 = vlaneseq
    %v127 = vshrl.u32 %v126, 7
    %v128 = vsub.s32 %v54, %v127
    %v129 = vrot.slane %v125, %v128
    %vm130 = vcmask 64512
    %v131 = vsel %vm130, %v129, 0
    %133 = vmatprep.subr.mxu0 0.0
    %134 = vmatpush1.msra.mxu0 %v26
    %135 = vmatprep.subr.mxu0 0.0
    %136 = vmatpush1.msra.mxu0 0.0
    %137 = vmatprep.subr.mxu0 0.0
    %138 = vmatpush1.msra.mxu0 0.0
    %139 = vmatprep.subr.mxu0 0.0
    %140 = vmatpush1.msra.mxu0 0.0
    %141 = vmatprep.subr.mxu0 0.0
    %142 = vmatpush1.msra.mxu0 0.0
    %143 = vmatprep.subr.mxu0 0.0
    %144 = vmatpush1.msra.mxu0 0.0
    %145 = vmatprep.subr.mxu0 0.0
    %146 = vmatpush1.msra.mxu0 0.0
    %147 = vmatprep.subr.mxu0 0.0
    %148 = vmatpush1.msra.mxu0 0.0
    %149 = vmatprep.subr.mxu0 0.0
    %150 = vmatpush1.msra.mxu0 0.0
    %151 = vmatprep.subr.mxu0 0.0
    %152 = vmatpush1.msra.mxu0 0.0
    %153 = vmatprep.subr.mxu0 0.0
    %154 = vmatpush1.msra.mxu0 0.0
    %155 = vmatprep.subr.mxu0 0.0
    %156 = vmatpush1.msra.mxu0 0.0
    %157 = vmatprep.subr.mxu0 0.0
    %158 = vmatpush1.msra.mxu0 0.0
    %159 = vmatprep.subr.mxu0 0.0
    %160 = vmatpush1.msra.mxu0 0.0
    %161 = vmatprep.subr.mxu0 0.0
    %162 = vmatpush1.msra.mxu0 0.0
    %163 = vmatprep.subr.mxu0 0.0
    %164 = vmatpush1.msra.mxu0 0.0
    %165 = vmatprep.subr.mxu0 0.0
    %166 = vmatpush1.msra.mxu0 0.0
    %167 = vmatprep.subr.mxu0 0.0
    %168 = vmatpush1.msra.mxu0 0.0
    %169 = vmatprep.subr.mxu0 0.0
    %170 = vmatpush1.msra.mxu0 0.0
    %171 = vmatprep.subr.mxu0 0.0
    %172 = vmatpush1.msra.mxu0 0.0
    %173 = vmatprep.subr.mxu0 0.0
    %174 = vmatpush1.msra.mxu0 0.0
    %175 = vmatprep.subr.mxu0 0.0
    %176 = vmatpush1.msra.mxu0 0.0
    %177 = vmatprep.subr.mxu0 0.0
    %178 = vmatpush1.msra.mxu0 0.0
    %179 = vmatprep.subr.mxu0 0.0
    %180 = vmatpush1.msra.mxu0 0.0
    %181 = vmatprep.subr.mxu0 0.0
    %182 = vmatpush1.msra.mxu0 0.0
    %183 = vmatprep.subr.mxu0 0.0
    %184 = vmatpush1.msra.mxu0 0.0
    %185 = vmatprep.subr.mxu0 0.0
    %186 = vmatpush1.msra.mxu0 0.0
    %187 = vmatprep.subr.mxu0 0.0
    %188 = vmatpush1.msra.mxu0 0.0
    %189 = vmatprep.subr.mxu0 0.0
    %190 = vmatpush1.msra.mxu0 0.0
    %191 = vmatprep.subr.mxu0 0.0
    %192 = vmatpush1.msra.mxu0 0.0
    %193 = vmatprep.subr.mxu0 0.0
    %194 = vmatpush1.msra.mxu0 0.0
    %195 = vmatprep.subr.mxu0 0.0
    %196 = vmatpush1.msra.mxu0 0.0
    %197 = vmatprep.mubr.f32.mxu0 0.0
    %198 = vmatmul.mubr.f32.gmra.mrb[0].mxu0 %v131
    %v199 = vpop.f32.mrb[0].mxu0
    %v200 = vadd.f32 0.0, %v199
    %v201 = vpop.f32.mrb[0].mxu0
    %202 = vdwg.mxu0
    %204 = vset.pattern.permute.xlu0 0
    %205 = vperm.xlu0 %204, %v121
    %v206 = vpop.permute.xlu0 %205
    %v207 = vlaneseq
    %v208 = vshrl.u32 %v207, 7
    %v209 = vsub.s32 %v54, %v208
    %v210 = vrot.slane %v206, %v209
    %v211 = vsel %vm130, %v210, 0
    %213 = vmatprep.subr.mxu0 0.0
    %214 = vmatpush1.msra.mxu0 %v27
    %215 = vmatprep.subr.mxu0 0.0
    %216 = vmatpush1.msra.mxu0 0.0
    %217 = vmatprep.subr.mxu0 0.0
    %218 = vmatpush1.msra.mxu0 0.0
    %219 = vmatprep.subr.mxu0 0.0
    %220 = vmatpush1.msra.mxu0 0.0
    %221 = vmatprep.subr.mxu0 0.0
    %222 = vmatpush1.msra.mxu0 0.0
    %223 = vmatprep.subr.mxu0 0.0
    %224 = vmatpush1.msra.mxu0 0.0
    %225 = vmatprep.subr.mxu0 0.0
    %226 = vmatpush1.msra.mxu0 0.0
    %227 = vmatprep.subr.mxu0 0.0
    %228 = vmatpush1.msra.mxu0 0.0
    %229 = vmatprep.subr.mxu0 0.0
    %230 = vmatpush1.msra.mxu0 0.0
    %231 = vmatprep.subr.mxu0 0.0
    %232 = vmatpush1.msra.mxu0 0.0
    %233 = vmatprep.subr.mxu0 0.0
    %234 = vmatpush1.msra.mxu0 0.0
    %235 = vmatprep.subr.mxu0 0.0
    %236 = vmatpush1.msra.mxu0 0.0
    %237 = vmatprep.subr.mxu0 0.0
    %238 = vmatpush1.msra.mxu0 0.0
    %239 = vmatprep.subr.mxu0 0.0
    %240 = vmatpush1.msra.mxu0 0.0
    %241 = vmatprep.subr.mxu0 0.0
    %242 = vmatpush1.msra.mxu0 0.0
    %243 = vmatprep.subr.mxu0 0.0
    %244 = vmatpush1.msra.mxu0 0.0
    %245 = vmatprep.subr.mxu0 0.0
    %246 = vmatpush1.msra.mxu0 0.0
    %247 = vmatprep.subr.mxu0 0.0
    %248 = vmatpush1.msra.mxu0 0.0
    %249 = vmatprep.subr.mxu0 0.0
    %250 = vmatpush1.msra.mxu0 0.0
    %251 = vmatprep.subr.mxu0 0.0
    %252 = vmatpush1.msra.mxu0 0.0
    %253 = vmatprep.subr.mxu0 0.0
    %254 = vmatpush1.msra.mxu0 0.0
    %255 = vmatprep.subr.mxu0 0.0
    %256 = vmatpush1.msra.mxu0 0.0
    %257 = vmatprep.subr.mxu0 0.0
    %258 = vmatpush1.msra.mxu0 0.0
    %259 = vmatprep.subr.mxu0 0.0
    %260 = vmatpush1.msra.mxu0 0.0
    %261 = vmatprep.subr.mxu0 0.0
    %262 = vmatpush1.msra.mxu0 0.0
    %263 = vmatprep.subr.mxu0 0.0
    %264 = vmatpush1.msra.mxu0 0.0
    %265 = vmatprep.subr.mxu0 0.0
    %266 = vmatpush1.msra.mxu0 0.0
    %267 = vmatprep.subr.mxu0 0.0
    %268 = vmatpush1.msra.mxu0 0.0
    %269 = vmatprep.subr.mxu0 0.0
    %270 = vmatpush1.msra.mxu0 0.0
    %271 = vmatprep.subr.mxu0 0.0
    %272 = vmatpush1.msra.mxu0 0.0
    %273 = vmatprep.subr.mxu0 0.0
    %274 = vmatpush1.msra.mxu0 0.0
    %275 = vmatprep.subr.mxu0 0.0
    %276 = vmatpush1.msra.mxu0 0.0
    %277 = vmatprep.mubr.f32.mxu0 0.0
    %278 = vmatmul.mubr.f32.gmra.mrb[0].mxu0 %v211
    %v279 = vpop.f32.mrb[0].mxu0
    %v280 = vadd.f32 0.0, %v279
    %v281 = vpop.f32.mrb[0].mxu0
    %282 = vdwg.mxu0
    %v285 = vrot.slane %v280, 7
    %v286 = vsel %vm63, %v285, %v200
    %vm288 = vcmask 254976
    %289 = vst.msk [vmem:[#allocation5] sm:$0x3] %vm288, %v286
    %v290 = vsel %vm63, %v210, %v129
    %292 = vst.msk [vmem:[#allocation6] sm:$0x3] %vm66, %v290
    // Predicated region
    $region10: #{tpu_custom_call.1} parent=1 // pred_check
      _
    $region11: #{tpu_custom_call.1} parent=1 // pred_check_branch
      %294 = sbr.rel (0) target = $region13
    $region12: #{tpu_custom_call.1} parent=1 // pred_region
      %s296 = ssub.s32 32, 32
      %297 = vsyncadd [#allocation4], %s296
      %s299 = sshll.u32 [#allocation5], 4
      %s300 = int_to_ptr.vmem [resolvable:$true] %s299
      %302 = dma.vmem_to_hbm [thread:$0]  %s300, 32, %s1, [#allocation4]
    $region13: #{tpu_custom_call.1} parent=1 // pred_fallthru
      _
    // Predicated region
    $region14: #{tpu_custom_call.1} parent=1 // pred_check
      _
    $region15: #{tpu_custom_call.1} parent=1 // pred_check_branch
      %304 = sbr.rel (0) target = $region17
    $region16: #{tpu_custom_call.1} parent=1 // pred_region
      %s306 = ssub.s32 32, 32
      %307 = vsyncadd [#allocation7], %s306
      %s309 = sshll.u32 [#allocation6], 4
      %s310 = int_to_ptr.vmem [resolvable:$true] %s309
      %312 = dma.vmem_to_hbm [thread:$0]  %s310, 32, %s2, [#allocation7]
    $region17: #{tpu_custom_call.1} parent=1 // pred_fallthru
      _
    // Predicated region
    $region18: #{tpu_custom_call.1} parent=1 // pred_check
      _
    $region19: #{tpu_custom_call.1} parent=1 // pred_check_branch
      %314 = sbr.rel (0) target = $region21
    $region20: #{tpu_custom_call.1} parent=1 // pred_region
      %315 = dma.done [#allocation4], 32
    $region21: #{tpu_custom_call.1} parent=1 // pred_fallthru
      _
    // Predicated region
    $region22: #{tpu_custom_call.1} parent=1 // pred_check
      _
    $region23: #{tpu_custom_call.1} parent=1 // pred_check_branch
      %317 = sbr.rel (0) target = $region25
    $region24: #{tpu_custom_call.1} parent=1 // pred_region
      %318 = dma.done [#allocation7], 32
    $region25: #{tpu_custom_call.1} parent=1 // pred_fallthru
      _
    %319 = vsyncpa [#allocation3], 1
    %320 = vsyncpa [#allocation4], 1
    %321 = vsyncpa [#allocation7], 1

</llo_original>
